<compile_context>
chip_gen: v5e
topology: v5e:2x2
jax: 0.10.0
libtpu: 0.0.40
codegen_flags: <defaults>
</compile_context>

<pallas_src>
import jax
import jax.numpy as jnp
from jax.experimental import pallas as pl
from jax.experimental.pallas import tpu as pltpu

LANES = 128
SUBLANES = 8
_MAX_TILE_ROWS = 8192              # 8192 * 128 * 4 B = 4 MiB per pipeline buffer
# 2 double-buffered buffers each for input & output = 4 x 4 MiB = 16 MiB peak,
# plus compiler slack. 48 MiB is above every chip's scoped-VMEM default
# (16/32/32 MiB on v5e/v6e/v7x) and leaves headroom under v7x's 64 MiB physical.
_VMEM_LIMIT_BYTES = 48 * 1024 * 1024


def _sigmoid_kernel(x_ref, o_ref):
    x = x_ref[...]
    # sigmoid(x) == 0.5 * (tanh(0.5 * x) + 1): 1 EUP op + 2 VALU ops, cheaper
    # than the multi-op reciprocal sequence of 1/(1+exp(-x)). Kernel remains
    # HBM-bound; this just shortens the per-block compute tail.
    o_ref[...] = 0.5 * (jnp.tanh(0.5 * x) + 1.0)


def _sigmoid_2d(x2d: jax.Array) -> jax.Array:
    """Run the sigmoid kernel over a lane-dense (rows, 128) slab."""
    rows, lanes = x2d.shape
    # Either a single full-array block (rows may be any count) or 8-aligned
    # tiles of up to 8192 rows with a (Pallas-handled) partial last block.
    tile_rows = rows if rows <= _MAX_TILE_ROWS else _MAX_TILE_ROWS
    grid = (pl.cdiv(rows, tile_rows),)
    nbytes = x2d.size * x2d.dtype.itemsize

    return pl.pallas_call(
        _sigmoid_kernel,
        out_shape=jax.ShapeDtypeStruct((rows, lanes), x2d.dtype),
        grid_spec=pltpu.PrefetchScalarGridSpec(
            num_scalar_prefetch=0,
            grid=grid,
            in_specs=[pl.BlockSpec((tile_rows, lanes), lambda i: (i, 0))],
            out_specs=pl.BlockSpec((tile_rows, lanes), lambda i: (i, 0)),
        ),
        compiler_params=pltpu.CompilerParams(
            dimension_semantics=("parallel",),
            vmem_limit_bytes=_VMEM_LIMIT_BYTES,
        ),
        cost_estimate=pl.CostEstimate(
            flops=3 * x2d.size,
            transcendentals=x2d.size,
            bytes_accessed=2 * nbytes,   # one read + one write of the slab
        ),
    )(x2d)


def pallas_sigmoid(x: jax.Array) -> jax.Array:
    """Applies sigmoid elementwise via a Pallas TPU kernel. Same shape/dtype as input."""
    orig_shape = x.shape
    n = x.size
    if n == 0:
        return x

    flat = jnp.ravel(x)  # free (bitcast) reshape for contiguous inputs

    if n % LANES == 0:
        # Fast path: no padding, no slicing -- the only HBM traffic is the
        # kernel's own read + write of the lane-dense slab.
        out2d = _sigmoid_2d(flat.reshape(n // LANES, LANES))
        return out2d.reshape(orig_shape)

    # Fallback for ragged sizes: pad only to the next multiple of 128 lanes,
    # run the same kernel, and slice the valid prefix back out.
    padded = pl.cdiv(n, LANES) * LANES
    flat = jnp.pad(flat, (0, padded - n))
    out2d = _sigmoid_2d(flat.reshape(padded // LANES, LANES))
    return out2d.reshape(-1)[:n].reshape(orig_shape)


if __name__ == "__main__":
    key = jax.random.PRNGKey(0)

    # Small shape consistent with "tensor of any shape": (2, 4, 16, 16)
    x = jax.random.normal(key, (2, 4, 16, 16), dtype=jnp.float32)
    y = jax.block_until_ready(pallas_sigmoid(x))
    y_ref = jax.nn.sigmoid(x)
    assert y.shape == x.shape and y.dtype == x.dtype
    assert jnp.allclose(y, y_ref, atol=1e-6, rtol=1e-6), "mismatch vs reference sigmoid"

    # Exercise the ragged-size fallback path (size = 105, not a multiple of 128).
    x_odd = jax.random.normal(jax.random.PRNGKey(1), (3, 5, 7), dtype=jnp.float32)
    y_odd = jax.block_until_ready(pallas_sigmoid(x_odd))
    assert y_odd.shape == x_odd.shape and y_odd.dtype == x_odd.dtype
    assert jnp.allclose(y_odd, jax.nn.sigmoid(x_odd), atol=1e-6, rtol=1e-6)

    # Exercise a multi-block lane-aligned shape (rows not a multiple of tile).
    x_big = jax.random.normal(jax.random.PRNGKey(2), (40, 128), dtype=jnp.float32)
    y_big = jax.block_until_ready(pallas_sigmoid(x_big))
    assert jnp.allclose(y_big, jax.nn.sigmoid(x_big), atol=1e-6, rtol=1e-6)

    print("KERNEL_OK")
</pallas_src>

<mosaic_0001>
module attributes {stable_mosaic.version = 11 : i64} {
  func.func @_sigmoid_kernel(%arg0: i32, %arg1: memref<16x128xf32, #tpu.memory_space<vmem>>, %arg2: memref<16x128xf32, #tpu.memory_space<vmem>>) attributes {dimension_semantics = [#tpu.dimension_semantics<parallel>], iteration_bounds = array<i64: 1>, scalar_prefetch = 0 : i64, scratch_operands = 0 : i64, tpu.core_type = #tpu.core_type<tc>, window_params = [{transform_indices = @transform_0, window_bounds = array<i64: 16, 128>}, {transform_indices = @transform_1, window_bounds = array<i64: 16, 128>}]} {
    %c0 = arith.constant 0 : index
    %c0_0 = arith.constant 0 : index
    %0 = vector.load %arg1[%c0, %c0_0] : memref<16x128xf32, #tpu.memory_space<vmem>>, vector<16x128xf32>
    %cst = arith.constant 5.000000e-01 : f32
    %1 = vector.broadcast %cst : f32 to vector<16x128xf32>
    %2 = arith.mulf %1, %0 : vector<16x128xf32>
    %3 = math.tanh %2 : vector<16x128xf32>
    %cst_1 = arith.constant 1.000000e+00 : f32
    %4 = vector.broadcast %cst_1 : f32 to vector<16x128xf32>
    %5 = arith.addf %3, %4 : vector<16x128xf32>
    %cst_2 = arith.constant 5.000000e-01 : f32
    %6 = vector.broadcast %cst_2 : f32 to vector<16x128xf32>
    %7 = arith.mulf %6, %5 : vector<16x128xf32>
    %c0_3 = arith.constant 0 : index
    %c0_4 = arith.constant 0 : index
    %8 = vector.load %arg2[%c0_3, %c0_4] : memref<16x128xf32, #tpu.memory_space<vmem>>, vector<16x128xf32>
    tpu.vector_store %arg2[%c0_3, %c0_4], %7 {strides = array<i32>} : memref<16x128xf32, #tpu.memory_space<vmem>>, vector<16x128xf32>,
    return
  }
  func.func @transform_0(%arg0: i32) -> (i32, i32) {
    %c0_i32 = arith.constant 0 : i32
    %c0_i32_0 = arith.constant 0 : i32
    return %arg0, %c0_i32 : i32, i32
  }
  func.func @transform_1(%arg0: i32) -> (i32, i32) {
    %c0_i32 = arith.constant 0 : i32
    %c0_i32_0 = arith.constant 0 : i32
    return %arg0, %c0_i32 : i32, i32
  }
}

</mosaic_0001>

<llo_original>
// kernel: tpu_custom_call.1
$region0: #{tpu_custom_call.1}
  #allocation0 [shape = 'u32[]', space=smem, size = 0x4, offset = 0x4, fixed_abs, tag = 'smem constant byte address 0x4 - core index']
  #allocation1 [shape = 'u32[72,128]{1,0:T(1,128)}', space=vmem, size = 0x9000, scoped, tag = 'internal scratch']
  %s0 = inlined_call_operand.hbm [shape: f32[16,128], index: 0, kind: input, shape index: {}]
  %s1 = inlined_call_operand.hbm [shape: f32[16,128], index: 1, kind: output, shape index: {}]
  %s2 = sld [smem:[#allocation0]]
  $region18: #{tpu_custom_call.1} parent=0
    _
  %s4 = ssub.s32 1, %s2
  %s5 = scalar_select 0, %s4, %s2
  $region1: #{tpu_custom_call.1} parent=0
    #allocation2 [shape = 'u8[8192]{0}', space=vmem, size = 0x2000, scoped, tag = 'input window, operand 0, single buffered']
    #allocation3 [shape = 's32[1]{0}', space=sflag, size = 0x4, scoped, tag = 'scoped memory for tpu_custom_call.1']
    #allocation4 [shape = 's32[1]{0}', space=sflag, size = 0x4, scoped, tag = 'scoped memory for tpu_custom_call.1']
    #allocation5 [shape = 'u8[8192]{0}', space=vmem, size = 0x2000, scoped, tag = 'output window, operand 0, single buffered']
    %6 = vsyncpa [#allocation3], 0
    %7 = vsyncpa [#allocation4], 0
    // Predicated region
    $region2: #{tpu_custom_call.1} parent=1 // pred_check
      _
    $region3: #{tpu_custom_call.1} parent=1 // pred_check_branch
      %9 = sbr.rel (0) target = $region5
    $region4: #{tpu_custom_call.1} parent=1 // pred_region
      %11 = vsyncadd [#allocation3], 0
      %s12 = sshll.u32 %s0, 4
      %s13 = int_to_ptr.hbm [resolvable:$true] %s12
      %s14 = sshll.u32 [#allocation2], 4
      %s15 = int_to_ptr.vmem [resolvable:$true] %s14
      %20 = dma.hbm_to_vmem [thread:$0]  %s13, 256, %s15, [#allocation3], 128, 128, 8
    $region5: #{tpu_custom_call.1} parent=1 // pred_fallthru
      _
    // Predicated region
    $region6: #{tpu_custom_call.1} parent=1 // pred_check
      _
    $region7: #{tpu_custom_call.1} parent=1 // pred_check_branch
      %22 = sbr.rel (0) target = $region9
    $region8: #{tpu_custom_call.1} parent=1 // pred_region
      %24 = dma.done [#allocation3], 256
    $region9: #{tpu_custom_call.1} parent=1 // pred_fallthru
      _
    %v25 = vld [vmem:[#allocation2] sm:$0xff]
    %v26 = vld [vmem:[#allocation2 + $0x8] sm:$0xff]
    %v27 = vmul.f32 %v25, 0.5
    %v28 = vmul.f32 %v26, 0.5
    %v29 = vtanh.pop %v27
    %v30 = vtanh.pop %v28
    %v31 = vadd.f32 %v29, 1.0
    %v32 = vadd.f32 %v30, 1.0
    %v33 = vmul.f32 %v31, 0.5
    %v34 = vmul.f32 %v32, 0.5
    %35 = vst [vmem:[#allocation5] sm:$0xff] %v33
    %36 = vst [vmem:[#allocation5 + $0x8] sm:$0xff] %v34
    // Predicated region
    $region10: #{tpu_custom_call.1} parent=1 // pred_check
      _
    $region11: #{tpu_custom_call.1} parent=1 // pred_check_branch
      %38 = sbr.rel (0) target = $region13
    $region12: #{tpu_custom_call.1} parent=1 // pred_region
      %40 = vsyncadd [#allocation4], 0
      %s41 = sshll.u32 [#allocation5], 4
      %s42 = int_to_ptr.vmem [resolvable:$true] %s41
      %s43 = sshll.u32 %s1, 4
      %s44 = int_to_ptr.hbm [resolvable:$true] %s43
      %49 = dma.vmem_to_hbm [thread:$0]  %s42, 256, %s44, [#allocation4], 128, 128, 8
    $region13: #{tpu_custom_call.1} parent=1 // pred_fallthru
      _
    // Predicated region
    $region14: #{tpu_custom_call.1} parent=1 // pred_check
      _
    $region15: #{tpu_custom_call.1} parent=1 // pred_check_branch
      %51 = sbr.rel (0) target = $region17
    $region16: #{tpu_custom_call.1} parent=1 // pred_region
      %53 = dma.done [#allocation4], 256
    $region17: #{tpu_custom_call.1} parent=1 // pred_fallthru
      _
    %54 = vsyncpa [#allocation3], 1
    %55 = vsyncpa [#allocation4], 1

</llo_original>
